<compile_context>
chip_gen: v7x
topology: tpu7x:2x2x1
jax: 0.10.0
libtpu: 0.0.40
codegen_flags: <defaults>
</compile_context>

<pallas_src>
import functools
from typing import NamedTuple, Sequence, Tuple

import jax
import jax.numpy as jnp
from jax.experimental import pallas as pl
from jax.experimental.pallas import tpu as pltpu


# ----------------------------------------------------------------------------
# Fused MLP forward kernel
# ----------------------------------------------------------------------------
def _mlp_fused_kernel(x_ref, b_ref, *w_and_out, dims, non_linear,
                      compute_dtype, lane_dense_head):
    """Fused MLP forward for one batch tile.

    x_ref : [TB, dims[0]]          activation tile (VMEM)
    b_ref : [n_layers, max_out]    packed f32 biases (VMEM, resident)
    w_and_out[:-1]                 per-layer weights (VMEM, resident, pre-cast):
        hidden / generic layer i : (dims[i], dims[i+1])   pre-transposed (in, out)
        lane-dense head          : (1, dims[-2])          natural (out=1, in) layout
    w_and_out[-1] :
        lane-dense head          : [1, TB]                (batch along lanes)
        generic                  : [TB, dims[-1]]
    """
    *w_refs, o_ref = w_and_out
    n_layers = len(dims) - 1

    h = x_ref[...]                                   # f32; stays in vregs/VMEM
    for i in range(n_layers):                        # static Python loop -> fully unrolled
        out_i = dims[i + 1]
        is_last = i == n_layers - 1
        w_i = w_refs[i][...]                         # already in compute dtype (pre-cast)
        b_i = b_ref[i:i + 1, 0:out_i]                # (1, out_i) f32

        if is_last and lane_dense_head:
            # Regression head: (1, K) contracted with (TB, K) on K -> (1, TB).
            # Batch lands on the lane axis so the HBM store is full-width vst's,
            # not masked (TB, 1) partial stores.  MXU is idle at these layer widths,
            # so the M=1 pass is free.
            y = jax.lax.dot_general(
                w_i, h.astype(compute_dtype),
                dimension_numbers=(((1,), (1,)), ((), ())),
                preferred_element_type=jnp.float32) + b_i          # b_i: (1, 1)
        else:
            y = jnp.dot(h.astype(compute_dtype), w_i,
                        preferred_element_type=jnp.float32) + b_i  # (TB, out_i)

        if non_linear and not is_last:
            y = jnp.maximum(y, 0.0)
        h = y

    o_ref[...] = h.astype(o_ref.dtype)


# ----------------------------------------------------------------------------
# Parameter handling (one-time, hoisted out of the forward path)
# ----------------------------------------------------------------------------
class PackedParams(NamedTuple):
    weights: Tuple[jax.Array, ...]
    b_packed: jax.Array
    dims: Tuple[int, ...]
    compute_dtype: object
    lane_dense_head: bool


def init_params(sizes: Sequence[int], key: jax.Array):
    """Deterministic init mimicking nn.Linear's default: U(-1/sqrt(fan_in), 1/sqrt(fan_in)).
    Weights stored PyTorch-style as (out, in); biases as (out,)."""
    params = []
    for i in range(len(sizes) - 1):
        fan_in, fan_out = sizes[i], sizes[i + 1]
        key, kw, kb = jax.random.split(key, 3)
        bound = 1.0 / jnp.sqrt(jnp.float32(fan_in))
        w = jax.random.uniform(kw, (fan_out, fan_in), jnp.float32, -bound, bound)
        b = jax.random.uniform(kb, (fan_out,), jnp.float32, -bound, bound)
        params.append((w, b))
    return params


def _default_use_bf16_matmul() -> bool:
    """bf16 MXU operands on v6e/v7x (native bf16 MXU); f32 on v5e/older/unknown."""
    try:
        kind = jax.devices()[0].device_kind.lower()
    except Exception:
        return False
    return ("v6" in kind) or ("v7" in kind)


def pack_params(params, use_bf16_matmul=None) -> PackedParams:
    """One-time parameter prep:
      * transpose hidden-layer weights to (in, out)
      * keep the out_features==1 head weight in natural (1, in) layout
      * pre-cast weights to the MXU compute dtype (removes per-tile weight casts in-kernel)
      * pack all biases into one (n_layers, max_out) f32 array (one DMA, not one per layer)
    """
    if use_bf16_matmul is None:
        use_bf16_matmul = _default_use_bf16_matmul()
    compute_dtype = jnp.bfloat16 if use_bf16_matmul else jnp.float32

    n_layers = len(params)
    dims = tuple([params[0][0].shape[1]] + [w.shape[0] for w, _ in params])
    lane_dense_head = dims[-1] == 1
    max_out = max(dims[1:])

    weights = []
    b_packed = jnp.zeros((n_layers, max_out), jnp.float32)
    for i, (w, b) in enumerate(params):
        out_i = dims[i + 1]
        w = jnp.asarray(w, jnp.float32)
        if i == n_layers - 1 and lane_dense_head:
            weights.append(w.astype(compute_dtype))                    # (1, in)
        else:
            weights.append(jnp.transpose(w).astype(compute_dtype))     # (in, out)
        b_packed = b_packed.at[i, :out_i].set(jnp.asarray(b, jnp.float32))
    return PackedParams(tuple(weights), b_packed, dims, compute_dtype, lane_dense_head)


# ----------------------------------------------------------------------------
# Forward wrapper
# ----------------------------------------------------------------------------
_MIN_TILE = 128       # tile granularity: sublane-friendly and lane-dense head store width
_TARGET_STEPS = 4     # >=2 grid steps feeds both v7x TensorCores; >=4 keeps the pipeline busy


def nn_regression_forward(x, packed: PackedParams, non_linear: bool = True, *,
                          batch_tile: int = 2048) -> jax.Array:
    """Equivalent of Nn_regression.forward: cast input to float32, run the fused
    Linear/ReLU stack in a single pallas_call (weights/biases VMEM-resident)."""
    weights, b_packed, dims, compute_dtype, lane_dense_head = packed
    x = jnp.asarray(x, dtype=jnp.float32)            # module casts input to float32
    B = x.shape[0]
    out_last = dims[-1]

    kernel = functools.partial(
        _mlp_fused_kernel, dims=dims, non_linear=non_linear,
        compute_dtype=compute_dtype, lane_dense_head=lane_dense_head)
    operands = (x, b_packed, *weights)

    if lane_dense_head:
        out_shape = jax.ShapeDtypeStruct((1, B), jnp.float32)   # batch along lanes
    else:
        out_shape = jax.ShapeDtypeStruct((B, out_last), jnp.float32)

    if B < 2 * _MIN_TILE:
        # Small batch: single grid-free fused invocation (whole arrays staged once).
        out = pl.pallas_call(kernel, out_shape=out_shape)(*operands)
    else:
        # Tile ONLY the batch axis.  Tile as large as batch_tile allows (per-step overhead
        # dominates this ~6 KFLOP/row net) but capped so the "parallel" grid has at least
        # _TARGET_STEPS steps -> both v7x TensorCores get work.  VMEM stays tiny
        # (< ~3 MB even at tb=4096), well under v5e's 16 MiB scoped-VMEM default, so no
        # explicit vmem_limit_bytes is needed.
        tb = min(batch_tile, max(_MIN_TILE, pl.cdiv(B, _TARGET_STEPS)))
        tb = ((tb + _MIN_TILE - 1) // _MIN_TILE) * _MIN_TILE
        grid = (pl.cdiv(B, tb),)

        # Weights / packed biases have constant index_maps: DMA'd once, VMEM-resident
        # across all grid steps.  (pl.Buffered(1) would also drop their second pipeline
        # buffer, but the bytes are trivial at these layer widths.)
        in_specs = [
            pl.BlockSpec((tb, dims[0]), lambda i: (i, 0)),
            pl.BlockSpec(b_packed.shape, lambda i: (0, 0)),
        ] + [pl.BlockSpec(w.shape, lambda i: (0, 0)) for w in weights]

        if lane_dense_head:
            out_specs = pl.BlockSpec((1, tb), lambda i: (0, i))     # lane-dense store
        else:
            out_specs = pl.BlockSpec((tb, out_last), lambda i: (i, 0))

        out = pl.pallas_call(
            kernel,
            out_shape=out_shape,
            grid=grid,
            in_specs=in_specs,
            out_specs=out_specs,
            compiler_params=pltpu.CompilerParams(
                dimension_semantics=("parallel",)),
        )(*operands)

    if lane_dense_head:
        out = out.reshape(B, 1)   # (1, B) -> (B, 1): pure metadata reshape, no transpose
    return out


# ----------------------------------------------------------------------------
# Pure-JAX reference (matches the PyTorch module exactly, f32 everywhere)
# ----------------------------------------------------------------------------
def reference_forward(x, params, non_linear: bool = True) -> jax.Array:
    h = jnp.asarray(x, dtype=jnp.float32)
    n_layers = len(params)
    for i, (w, b) in enumerate(params):
        h = h @ w.T + b
        if non_linear and i < n_layers - 1:
            h = jnp.maximum(h, 0.0)
    return h


if __name__ == "__main__":
    # Module-consistent small shapes: Nn_regression(sizes=[32, 64, 16, 1])
    sizes = [32, 64, 16, 1]

    key = jax.random.PRNGKey(0)
    key, kx, kx2 = jax.random.split(key, 3)

    params = init_params(sizes, key)          # PyTorch-layout params (out, in)

    # f32 pack: exact-path correctness checks on every generation.
    packed_f32 = pack_params(params, use_bf16_matmul=False)

    # Small batch -> single grid-free fused call.
    x_small = jax.random.normal(kx, (8, sizes[0]), dtype=jnp.float32)
    out_small = jax.block_until_ready(nn_regression_forward(x_small, packed_f32))
    ref_small = reference_forward(x_small, params)
    assert out_small.shape == (8, 1)
    assert jnp.allclose(out_small, ref_small, atol=1e-4, rtol=1e-4), "small-batch mismatch"

    # Larger batch -> batch-tiled "parallel" grid, lane-dense (1, B) output.
    x_big = jax.random.normal(kx2, (512, sizes[0]), dtype=jnp.float32)
    out_big = jax.block_until_ready(nn_regression_forward(x_big, packed_f32))
    ref_big = reference_forward(x_big, params)
    assert out_big.shape == (512, 1)
    assert jnp.allclose(out_big, ref_big, atol=1e-4, rtol=1e-4), "tiled-batch mismatch"

    # Generation-default pack (bf16 MXU operands on v6e/v7x, f32 elsewhere); relaxed tol.
    packed_auto = pack_params(params)
    out_auto = jax.block_until_ready(nn_regression_forward(x_big, packed_auto))
    assert out_auto.shape == (512, 1)
    assert jnp.allclose(out_auto, ref_big, atol=3e-2, rtol=3e-2), "auto-dtype mismatch"

    # TODO(synk): fit()/predict() (SGD + L1Loss training loop) are training utilities,
    # not part of the forward pass, and are intentionally not implemented here.
    print("KERNEL_OK")
</pallas_src>

<mosaic_0001>
module attributes {stable_mosaic.version = 11 : i64} {
  func.func @_mlp_fused_kernel(%arg0: memref<8x32xf32, #tpu.memory_space<vmem>>, %arg1: memref<3x64xf32, #tpu.memory_space<vmem>>, %arg2: memref<32x64xf32, #tpu.memory_space<vmem>>, %arg3: memref<64x16xf32, #tpu.memory_space<vmem>>, %arg4: memref<1x16xf32, #tpu.memory_space<vmem>>, %arg5: memref<1x8xf32, #tpu.memory_space<vmem>>) attributes {dimension_semantics = [], scalar_prefetch = 0 : i64, scratch_operands = 0 : i64, tpu.core_type = #tpu.core_type<tc>} {
    %c0 = arith.constant 0 : index
    %c0_0 = arith.constant 0 : index
    %0 = vector.load %arg0[%c0, %c0_0] : memref<8x32xf32, #tpu.memory_space<vmem>>, vector<8x32xf32>
    %c0_1 = arith.constant 0 : index
    %c0_2 = arith.constant 0 : index
    %1 = vector.load %arg2[%c0_1, %c0_2] : memref<32x64xf32, #tpu.memory_space<vmem>>, vector<32x64xf32>
    %c0_3 = arith.constant 0 : index
    %c0_4 = arith.constant 0 : index
    %2 = vector.load %arg1[%c0_3, %c0_4] : memref<3x64xf32, #tpu.memory_space<vmem>>, vector<1x64xf32>
    %cst = arith.constant dense<0.000000e+00> : vector<8x64xf32>
    %3 = tpu.matmul %0, %1, %cst {dimension_numbers = #tpu.dot_dimension_numbers<[1], [0], [0], [1], [0, 0, 1, 1], [], []>} : vector<8x32xf32>, vector<32x64xf32>, vector<8x64xf32> -> vector<8x64xf32>
    %4 = vector.broadcast %2 : vector<1x64xf32> to vector<8x64xf32>
    %5 = arith.addf %3, %4 : vector<8x64xf32>
    %cst_5 = arith.constant 0.000000e+00 : f32
    %6 = vector.broadcast %cst_5 : f32 to vector<8x64xf32>
    %7 = arith.maximumf %5, %6 : vector<8x64xf32>
    %c0_6 = arith.constant 0 : index
    %c0_7 = arith.constant 0 : index
    %8 = vector.load %arg3[%c0_6, %c0_7] : memref<64x16xf32, #tpu.memory_space<vmem>>, vector<64x16xf32>
    %c1 = arith.constant 1 : index
    %c0_8 = arith.constant 0 : index
    %9 = vector.load %arg1[%c1, %c0_8] : memref<3x64xf32, #tpu.memory_space<vmem>>, vector<1x16xf32>
    %cst_9 = arith.constant dense<0.000000e+00> : vector<8x16xf32>
    %10 = tpu.matmul %7, %8, %cst_9 {dimension_numbers = #tpu.dot_dimension_numbers<[1], [0], [0], [1], [0, 0, 1, 1], [], []>} : vector<8x64xf32>, vector<64x16xf32>, vector<8x16xf32> -> vector<8x16xf32>
    %11 = vector.broadcast %9 : vector<1x16xf32> to vector<8x16xf32>
    %12 = arith.addf %10, %11 : vector<8x16xf32>
    %cst_10 = arith.constant 0.000000e+00 : f32
    %13 = vector.broadcast %cst_10 : f32 to vector<8x16xf32>
    %14 = arith.maximumf %12, %13 : vector<8x16xf32>
    %c0_11 = arith.constant 0 : index
    %c0_12 = arith.constant 0 : index
    %15 = vector.load %arg4[%c0_11, %c0_12] : memref<1x16xf32, #tpu.memory_space<vmem>>, vector<1x16xf32>
    %c2 = arith.constant 2 : index
    %c0_13 = arith.constant 0 : index
    %16 = vector.load %arg1[%c2, %c0_13] : memref<3x64xf32, #tpu.memory_space<vmem>>, vector<1x1xf32>
    %cst_14 = arith.constant dense<0.000000e+00> : vector<1x8xf32>
    %17 = tpu.matmul %15, %14, %cst_14 {dimension_numbers = #tpu.dot_dimension_numbers<[1], [1], [0], [0], [0, 0, 1, 0], [], []>} : vector<1x16xf32>, vector<8x16xf32>, vector<1x8xf32> -> vector<1x8xf32>
    %18 = vector.broadcast %16 : vector<1x1xf32> to vector<1x8xf32>
    %19 = arith.addf %17, %18 : vector<1x8xf32>
    %c0_15 = arith.constant 0 : index
    %c0_16 = arith.constant 0 : index
    %20 = vector.load %arg5[%c0_15, %c0_16] : memref<1x8xf32, #tpu.memory_space<vmem>>, vector<1x8xf32>
    tpu.vector_store %arg5[%c0_15, %c0_16], %19 {strides = array<i32>} : memref<1x8xf32, #tpu.memory_space<vmem>>, vector<1x8xf32>,
    return
  }
}

</mosaic_0001>

<llo_original>
// kernel: tpu_custom_call.1
$region0: #{tpu_custom_call.1}
  #allocation0 [shape = 'u32[]', space=smem, size = 0x4, offset = 0x4, fixed_abs, tag = 'smem constant byte address 0x4 - core index']
  #allocation1 [shape = 'u32[144,128]{1,0:T(1,128)}', space=vmem, size = 0x12000, scoped, tag = 'internal scratch']
  %s0 = inlined_call_operand.vmem [shape: f32[8,32], index: 0, kind: input, shape index: {}]
  %s1 = inlined_call_operand.vmem [shape: f32[3,64], index: 1, kind: input, shape index: {}]
  %s2 = inlined_call_operand.vmem [shape: f32[32,64], index: 2, kind: input, shape index: {}]
  %s3 = inlined_call_operand.vmem [shape: f32[64,16], index: 3, kind: input, shape index: {}]
  %s4 = inlined_call_operand.vmem [shape: f32[1,16], index: 4, kind: input, shape index: {}]
  %s5 = inlined_call_operand.hbm [shape: f32[1,8], index: 5, kind: output, shape index: {}]
  %s6 = sld [smem:[#allocation0]]
  $region30: #{tpu_custom_call.1} parent=0
    _
  %s8 = ssub.s32 1, %s6
  %s9 = scalar_select 0, %s8, %s6
  $region1: #{tpu_custom_call.1} parent=0
    #allocation2 [shape = 'u8[512]{0}', space=vmem, size = 0x400, scoped, tag = 'output window, operand 0, single buffered']
    #allocation3 [shape = 's32[1]{0}', space=sflag, size = 0x4, scoped, tag = 'scoped memory for tpu_custom_call.1']
    %10 = vsyncpa [#allocation3], 0
    // Predicated region
    $region2: #{tpu_custom_call.1} parent=1 // pred_check
      _
    $region3: #{tpu_custom_call.1} parent=1 // pred_check_branch
      %12 = sbr.rel (0) target = $region5
    $region4: #{tpu_custom_call.1} parent=1 // pred_region
      _
    $region5: #{tpu_custom_call.1} parent=1 // pred_fallthru
      _
    // Predicated region
    $region6: #{tpu_custom_call.1} parent=1 // pred_check
      _
    $region7: #{tpu_custom_call.1} parent=1 // pred_check_branch
      %14 = sbr.rel (0) target = $region9
    $region8: #{tpu_custom_call.1} parent=1 // pred_region
      _
    $region9: #{tpu_custom_call.1} parent=1 // pred_fallthru
      _
    // Predicated region
    $region10: #{tpu_custom_call.1} parent=1 // pred_check
      _
    $region11: #{tpu_custom_call.1} parent=1 // pred_check_branch
      %16 = sbr.rel (0) target = $region13
    $region12: #{tpu_custom_call.1} parent=1 // pred_region
      _
    $region13: #{tpu_custom_call.1} parent=1 // pred_fallthru
      _
    // Predicated region
    $region14: #{tpu_custom_call.1} parent=1 // pred_check
      _
    $region15: #{tpu_custom_call.1} parent=1 // pred_check_branch
      %18 = sbr.rel (0) target = $region17
    $region16: #{tpu_custom_call.1} parent=1 // pred_region
      _
    $region17: #{tpu_custom_call.1} parent=1 // pred_fallthru
      _
    // Predicated region
    $region18: #{tpu_custom_call.1} parent=1 // pred_check
      _
    $region19: #{tpu_custom_call.1} parent=1 // pred_check_branch
      %20 = sbr.rel (0) target = $region21
    $region20: #{tpu_custom_call.1} parent=1 // pred_region
      _
    $region21: #{tpu_custom_call.1} parent=1 // pred_fallthru
      _
    %v21 = vld [vmem:[%s0] sm:$0xff]
    %v22 = vld [vmem:[%s2] sm:$0xff]
    %v23 = vld [vmem:[%s2 + $0x8] sm:$0xff]
    %v24 = vld [vmem:[%s2 + $0x10] sm:$0xff]
    %v25 = vld [vmem:[%s2 + $0x18] sm:$0xff]
    %v26 = vld [vmem:[%s1] sm:$0x1]
    %v27 = vlaneseq
    %v28 = vshrl.u32 %v27, 7
    %v29 = vsub.s32 0, %v28
    %v30 = vrot.slane %v26, %v29
    %vm31 = vcmask 261120
    %v33 = vsel %vm31, %v21, 0
    %35 = vmatprep.subr.mxu0 0.0
    %36 = vmatpush1.msra.mxu0 %v22
    %37 = vmatprep.subr.mxu0 0.0
    %38 = vmatpush1.msra.mxu0 %v23
    %39 = vmatprep.subr.mxu0 0.0
    %40 = vmatpush1.msra.mxu0 %v24
    %41 = vmatprep.subr.mxu0 0.0
    %42 = vmatpush1.msra.mxu0 %v25
    %43 = vmatprep.subr.mxu0 0.0
    %44 = vmatpush1.msra.mxu0 0.0
    %45 = vmatprep.subr.mxu0 0.0
    %46 = vmatpush1.msra.mxu0 0.0
    %47 = vmatprep.subr.mxu0 0.0
    %48 = vmatpush1.msra.mxu0 0.0
    %49 = vmatprep.subr.mxu0 0.0
    %50 = vmatpush1.msra.mxu0 0.0
    %51 = vmatprep.subr.mxu0 0.0
    %52 = vmatpush1.msra.mxu0 0.0
    %53 = vmatprep.subr.mxu0 0.0
    %54 = vmatpush1.msra.mxu0 0.0
    %55 = vmatprep.subr.mxu0 0.0
    %56 = vmatpush1.msra.mxu0 0.0
    %57 = vmatprep.subr.mxu0 0.0
    %58 = vmatpush1.msra.mxu0 0.0
    %59 = vmatprep.subr.mxu0 0.0
    %60 = vmatpush1.msra.mxu0 0.0
    %61 = vmatprep.subr.mxu0 0.0
    %62 = vmatpush1.msra.mxu0 0.0
    %63 = vmatprep.subr.mxu0 0.0
    %64 = vmatpush1.msra.mxu0 0.0
    %65 = vmatprep.subr.mxu0 0.0
    %66 = vmatpush1.msra.mxu0 0.0
    %67 = vmatprep.subr.mxu0 0.0
    %68 = vmatpush1.msra.mxu0 0.0
    %69 = vmatprep.subr.mxu0 0.0
    %70 = vmatpush1.msra.mxu0 0.0
    %71 = vmatprep.subr.mxu0 0.0
    %72 = vmatpush1.msra.mxu0 0.0
    %73 = vmatprep.subr.mxu0 0.0
    %74 = vmatpush1.msra.mxu0 0.0
    %75 = vmatprep.subr.mxu0 0.0
    %76 = vmatpush1.msra.mxu0 0.0
    %77 = vmatprep.subr.mxu0 0.0
    %78 = vmatpush1.msra.mxu0 0.0
    %79 = vmatprep.subr.mxu0 0.0
    %80 = vmatpush1.msra.mxu0 0.0
    %81 = vmatprep.subr.mxu0 0.0
    %82 = vmatpush1.msra.mxu0 0.0
    %83 = vmatprep.subr.mxu0 0.0
    %84 = vmatpush1.msra.mxu0 0.0
    %85 = vmatprep.subr.mxu0 0.0
    %86 = vmatpush1.msra.mxu0 0.0
    %87 = vmatprep.subr.mxu0 0.0
    %88 = vmatpush1.msra.mxu0 0.0
    %89 = vmatprep.subr.mxu0 0.0
    %90 = vmatpush1.msra.mxu0 0.0
    %91 = vmatprep.subr.mxu0 0.0
    %92 = vmatpush1.msra.mxu0 0.0
    %93 = vmatprep.subr.mxu0 0.0
    %94 = vmatpush1.msra.mxu0 0.0
    %95 = vmatprep.subr.mxu0 0.0
    %96 = vmatpush1.msra.mxu0 0.0
    %97 = vmatprep.subr.mxu0 0.0
    %98 = vmatpush1.msra.mxu0 0.0
    %99 = vmatprep.mubr.f32.mxu0 0.0
    %100 = vmatmul.mubr.f32.gmra.mrb[0].mxu0 %v33
    %v101 = vpop.f32.mrb[0].mxu0
    %v102 = vadd.f32 %v30, %v101
    %v103 = vpop.f32.mrb[0].mxu0
    %104 = vdwg.mxu0
    %v105 = vmax.f32 %v102, 0.0
    %v106 = vld [vmem:[%s3] sm:$0xff]
    %v107 = vld [vmem:[%s3 + $0x8] sm:$0xff]
    %v108 = vld [vmem:[%s3 + $0x10] sm:$0xff]
    %v109 = vld [vmem:[%s3 + $0x18] sm:$0xff]
    %v110 = vld [vmem:[%s3 + $0x20] sm:$0xff]
    %v111 = vld [vmem:[%s3 + $0x28] sm:$0xff]
    %v112 = vld [vmem:[%s3 + $0x30] sm:$0xff]
    %v113 = vld [vmem:[%s3 + $0x38] sm:$0xff]
    %v114 = vld [vmem:[%s1 + $0x1] sm:$0x1]
    %v115 = vlaneseq
    %v116 = vshrl.u32 %v115, 7
    %v117 = vsub.s32 0, %v116
    %v118 = vrot.slane %v114, %v117
    %vm119 = vcmask 523264
    %v121 = vsel %vm119, %v105, 0
    %123 = vmatprep.subr.mxu0 0.0
    %124 = vmatpush1.msra.mxu0 %v106
    %125 = vmatprep.subr.mxu0 0.0
    %126 = vmatpush1.msra.mxu0 %v107
    %127 = vmatprep.subr.mxu0 0.0
    %128 = vmatpush1.msra.mxu0 %v108
    %129 = vmatprep.subr.mxu0 0.0
    %130 = vmatpush1.msra.mxu0 %v109
    %131 = vmatprep.subr.mxu0 0.0
    %132 = vmatpush1.msra.mxu0 %v110
    %133 = vmatprep.subr.mxu0 0.0
    %134 = vmatpush1.msra.mxu0 %v111
    %135 = vmatprep.subr.mxu0 0.0
    %136 = vmatpush1.msra.mxu0 %v112
    %137 = vmatprep.subr.mxu0 0.0
    %138 = vmatpush1.msra.mxu0 %v113
    %139 = vmatprep.subr.mxu0 0.0
    %140 = vmatpush1.msra.mxu0 0.0
    %141 = vmatprep.subr.mxu0 0.0
    %142 = vmatpush1.msra.mxu0 0.0
    %143 = vmatprep.subr.mxu0 0.0
    %144 = vmatpush1.msra.mxu0 0.0
    %145 = vmatprep.subr.mxu0 0.0
    %146 = vmatpush1.msra.mxu0 0.0
    %147 = vmatprep.subr.mxu0 0.0
    %148 = vmatpush1.msra.mxu0 0.0
    %149 = vmatprep.subr.mxu0 0.0
    %150 = vmatpush1.msra.mxu0 0.0
    %151 = vmatprep.subr.mxu0 0.0
    %152 = vmatpush1.msra.mxu0 0.0
    %153 = vmatprep.subr.mxu0 0.0
    %154 = vmatpush1.msra.mxu0 0.0
    %155 = vmatprep.subr.mxu0 0.0
    %156 = vmatpush1.msra.mxu0 0.0
    %157 = vmatprep.subr.mxu0 0.0
    %158 = vmatpush1.msra.mxu0 0.0
    %159 = vmatprep.subr.mxu0 0.0
    %160 = vmatpush1.msra.mxu0 0.0
    %161 = vmatprep.subr.mxu0 0.0
    %162 = vmatpush1.msra.mxu0 0.0
    %163 = vmatprep.subr.mxu0 0.0
    %164 = vmatpush1.msra.mxu0 0.0
    %165 = vmatprep.subr.mxu0 0.0
    %166 = vmatpush1.msra.mxu0 0.0
    %167 = vmatprep.subr.mxu0 0.0
    %168 = vmatpush1.msra.mxu0 0.0
    %169 = vmatprep.subr.mxu0 0.0
    %170 = vmatpush1.msra.mxu0 0.0
    %171 = vmatprep.subr.mxu0 0.0
    %172 = vmatpush1.msra.mxu0 0.0
    %173 = vmatprep.subr.mxu0 0.0
    %174 = vmatpush1.msra.mxu0 0.0
    %175 = vmatprep.subr.mxu0 0.0
    %176 = vmatpush1.msra.mxu0 0.0
    %177 = vmatprep.subr.mxu0 0.0
    %178 = vmatpush1.msra.mxu0 0.0
    %179 = vmatprep.subr.mxu0 0.0
    %180 = vmatpush1.msra.mxu0 0.0
    %181 = vmatprep.subr.mxu0 0.0
    %182 = vmatpush1.msra.mxu0 0.0
    %183 = vmatprep.subr.mxu0 0.0
    %184 = vmatpush1.msra.mxu0 0.0
    %185 = vmatprep.subr.mxu0 0.0
    %186 = vmatpush1.msra.mxu0 0.0
    %187 = vmatprep.mubr.f32.mxu0 0.0
    %188 = vmatmul.mubr.f32.gmra.mrb[0].mxu0 %v121
    %v189 = vpop.f32.mrb[0].mxu0
    %v190 = vadd.f32 %v118, %v189
    %v191 = vpop.f32.mrb[0].mxu0
    %192 = vdwg.mxu0
    %v193 = vmax.f32 %v190, 0.0
    %v194 = vld [vmem:[%s4] sm:$0x1]
    %v195 = vld [vmem:[%s1 + $0x2] sm:$0x1]
    %197 = vset.pattern.permute.xlu0 0
    %198 = vperm.xlu0 %197, %v195
    %v199 = vpop.permute.xlu0 %198
    %vm201 = vcmask 130048
    %v203 = vsel %vm201, %v194, 0
    %v206 = vsel %vm201, %v193, 0
    %208 = vmatprep.subr.mxu0 0.0
    %209 = vmatpush1.xpose.msra.mxu0 %v206
    %210 = vmatprep.subr.mxu0 0.0
    %211 = vmatpush1.xpose.msra.mxu0 0.0
    %212 = vmatprep.subr.mxu0 0.0
    %213 = vmatpush1.xpose.msra.mxu0 0.0
    %214 = vmatprep.subr.mxu0 0.0
    %215 = vmatpush1.xpose.msra.mxu0 0.0
    %216 = vmatprep.subr.mxu0 0.0
    %217 = vmatpush1.xpose.msra.mxu0 0.0
    %218 = vmatprep.subr.mxu0 0.0
    %219 = vmatpush1.xpose.msra.mxu0 0.0
    %220 = vmatprep.subr.mxu0 0.0
    %221 = vmatpush1.xpose.msra.mxu0 0.0
    %222 = vmatprep.subr.mxu0 0.0
    %223 = vmatpush1.xpose.msra.mxu0 0.0
    %224 = vmatprep.subr.mxu0 0.0
    %225 = vmatpush1.xpose.msra.mxu0 0.0
    %226 = vmatprep.subr.mxu0 0.0
    %227 = vmatpush1.xpose.msra.mxu0 0.0
    %228 = vmatprep.subr.mxu0 0.0
    %229 = vmatpush1.xpose.msra.mxu0 0.0
    %230 = vmatprep.subr.mxu0 0.0
    %231 = vmatpush1.xpose.msra.mxu0 0.0
    %232 = vmatprep.subr.mxu0 0.0
    %233 = vmatpush1.xpose.msra.mxu0 0.0
    %234 = vmatprep.subr.mxu0 0.0
    %235 = vmatpush1.xpose.msra.mxu0 0.0
    %236 = vmatprep.subr.mxu0 0.0
    %237 = vmatpush1.xpose.msra.mxu0 0.0
    %238 = vmatprep.subr.mxu0 0.0
    %239 = vmatpush1.xpose.msra.mxu0 0.0
    %240 = vmatprep.subr.mxu0 0.0
    %241 = vmatpush1.xpose.msra.mxu0 0.0
    %242 = vmatprep.subr.mxu0 0.0
    %243 = vmatpush1.xpose.msra.mxu0 0.0
    %244 = vmatprep.subr.mxu0 0.0
    %245 = vmatpush1.xpose.msra.mxu0 0.0
    %246 = vmatprep.subr.mxu0 0.0
    %247 = vmatpush1.xpose.msra.mxu0 0.0
    %248 = vmatprep.subr.mxu0 0.0
    %249 = vmatpush1.xpose.msra.mxu0 0.0
    %250 = vmatprep.subr.mxu0 0.0
    %251 = vmatpush1.xpose.msra.mxu0 0.0
    %252 = vmatprep.subr.mxu0 0.0
    %253 = vmatpush1.xpose.msra.mxu0 0.0
    %254 = vmatprep.subr.mxu0 0.0
    %255 = vmatpush1.xpose.msra.mxu0 0.0
    %256 = vmatprep.subr.mxu0 0.0
    %257 = vmatpush1.xpose.msra.mxu0 0.0
    %258 = vmatprep.subr.mxu0 0.0
    %259 = vmatpush1.xpose.msra.mxu0 0.0
    %260 = vmatprep.subr.mxu0 0.0
    %261 = vmatpush1.xpose.msra.mxu0 0.0
    %262 = vmatprep.subr.mxu0 0.0
    %263 = vmatpush1.xpose.msra.mxu0 0.0
    %264 = vmatprep.subr.mxu0 0.0
    %265 = vmatpush1.xpose.msra.mxu0 0.0
    %266 = vmatprep.subr.mxu0 0.0
    %267 = vmatpush1.xpose.msra.mxu0 0.0
    %268 = vmatprep.subr.mxu0 0.0
    %269 = vmatpush1.xpose.msra.mxu0 0.0
    %270 = vmatprep.subr.mxu0 0.0
    %271 = vmatpush1.xpose.msra.mxu0 0.0
    %272 = vmatprep.mubr.f32.mxu0 0.0
    %273 = vmatmul.mubr.f32.gmra.mrb[0].mxu0 %v203
    %v274 = vpop.f32.mrb[0].mxu0
    %v275 = vadd.f32 %v199, %v274
    %v276 = vpop.f32.mrb[0].mxu0
    %277 = vdwg.mxu0
    %vm278 = vcmask 57344
    %279 = vst.msk [vmem:[#allocation2] sm:$0x1] %vm278, %v275
    // Predicated region
    $region22: #{tpu_custom_call.1} parent=1 // pred_check
      _
    $region23: #{tpu_custom_call.1} parent=1 // pred_check_branch
      %281 = sbr.rel (0) target = $region25
    $region24: #{tpu_custom_call.1} parent=1 // pred_region
      %s283 = ssub.s32 16, 16
      %284 = vsyncadd [#allocation3], %s283
      %s286 = sshll.u32 [#allocation2], 4
      %s287 = int_to_ptr.vmem [resolvable:$true] %s286
      %289 = dma.vmem_to_hbm [thread:$0]  %s287, 16, %s5, [#allocation3]
    $region25: #{tpu_custom_call.1} parent=1 // pred_fallthru
      _
    // Predicated region
    $region26: #{tpu_custom_call.1} parent=1 // pred_check
      _
    $region27: #{tpu_custom_call.1} parent=1 // pred_check_branch
      %291 = sbr.rel (0) target = $region29
    $region28: #{tpu_custom_call.1} parent=1 // pred_region
      %292 = dma.done [#allocation3], 16
    $region29: #{tpu_custom_call.1} parent=1 // pred_fallthru
      _
    %293 = vsyncpa [#allocation3], 1

</llo_original>
